<compile_context>
chip_gen: v7x
topology: tpu7x:2x2x1
jax: 0.10.0
libtpu: 0.0.40
codegen_flags: <defaults>
</compile_context>

<pallas_src>
import math

import jax
import jax.numpy as jnp
from jax import lax
from jax.experimental import pallas as pl
from jax.experimental.pallas import tpu as pltpu


# ---------------------------------------------------------------------------
# Kernel 1: encoder embedding + input projection (B*S folded into matmul M).
#   out[m] = onehot(ids[m]) @ emb @ W_ih^T + b_ih
# ---------------------------------------------------------------------------
def _embed_inproj_kernel(ids_ref, emb_ref, wih_ref, bih_ref, o_ref):
    m = ids_ref.shape[0]
    v = emb_ref.shape[0]
    onehot = (lax.broadcasted_iota(jnp.int32, (m, v), 1)
              == ids_ref[...]).astype(jnp.float32)
    x = jnp.dot(onehot, emb_ref[...], preferred_element_type=jnp.float32)  # (M, E)
    o_ref[...] = (jnp.dot(x, wih_ref[...], preferred_element_type=jnp.float32)
                  + bih_ref[...])


def embed_and_project(ids_flat, emb, wih_t, bih):
    m = ids_flat.shape[0]
    g3 = wih_t.shape[1]
    return pl.pallas_call(
        _embed_inproj_kernel,
        out_shape=jax.ShapeDtypeStruct((m, g3), jnp.float32),
    )(ids_flat, emb, wih_t, bih)


# ---------------------------------------------------------------------------
# Shared GRU gate math (PyTorch semantics, gate order r, z, n).
# ---------------------------------------------------------------------------
def _gru_gates(gx, gh, h, e):
    r = jax.nn.sigmoid(gx[:, :e] + gh[:, :e])
    z = jax.nn.sigmoid(gx[:, e:2 * e] + gh[:, e:2 * e])
    n = jnp.tanh(gx[:, 2 * e:] + r * gh[:, 2 * e:])
    return (1.0 - z) * n + z * h


# ---------------------------------------------------------------------------
# Kernel 2: encoder recurrence. Grid over time; the output block (constant
# index_map) is the resident carry = last hidden (packed-sequence semantics
# via per-step validity mask, equivalent to pack_padded_sequence last_hidden).
# ---------------------------------------------------------------------------
def _encoder_rnn_kernel(xp_ref, mask_ref, whh_ref, bhh_ref, h_ref):
    t = pl.program_id(0)

    @pl.when(t == 0)
    def _():
        h_ref[...] = jnp.zeros_like(h_ref)      # PyTorch default h0 = 0

    e = whh_ref.shape[0]
    h = h_ref[...]
    gx = xp_ref[0]                               # (B, 3E), precomputed x@W_ih^T + b_ih
    gh = jnp.dot(h, whh_ref[...], preferred_element_type=jnp.float32) + bhh_ref[...]
    h_new = _gru_gates(gx, gh, h, e)
    m = mask_ref[0]                              # (B, 1): 1.0 while t < seqlen[b]
    h_ref[...] = m * h_new + (1.0 - m) * h


def encoder_last_hidden(x_proj_tm, mask_tm, whh_t, bhh):
    s, b, g3 = x_proj_tm.shape
    e = whh_t.shape[0]
    return pl.pallas_call(
        _encoder_rnn_kernel,
        out_shape=jax.ShapeDtypeStruct((b, e), jnp.float32),
        grid_spec=pltpu.PrefetchScalarGridSpec(
            num_scalar_prefetch=0,
            grid=(s,),
            in_specs=[
                pl.BlockSpec((1, b, g3), lambda t: (t, 0, 0)),
                pl.BlockSpec((1, b, 1), lambda t: (t, 0, 0)),
                pl.BlockSpec((e, g3), lambda t: (0, 0)),
                pl.BlockSpec((1, g3), lambda t: (0, 0)),
            ],
            out_specs=pl.BlockSpec((b, e), lambda t: (0, 0)),
        ),
        compiler_params=pltpu.CompilerParams(
            dimension_semantics=("arbitrary",)),
    )(x_proj_tm, mask_tm, whh_t, bhh)


# ---------------------------------------------------------------------------
# Kernel 3: fused greedy decoder. One grid step per generated token; hidden
# state + fed-back token live in VMEM scratch; embedding table, GRU weights
# and the output projection stay VMEM-resident for the whole decode.
# ---------------------------------------------------------------------------
def _greedy_decode_kernel(start_ref, h0_ref, emb_ref, wih_ref, bih_ref,
                          whh_ref, bhh_ref, wfc_ref,
                          logits_ref, yhat_ref, h_scr, tok_scr):
    t = pl.program_id(0)

    @pl.when(t == 0)
    def _():
        h_scr[...] = h0_ref[...]
        tok_scr[...] = start_ref[...]

    b, e = h_scr.shape
    v = emb_ref.shape[0]

    # embedding lookup of the current (data-dependent) token: one-hot @ table
    onehot = (lax.broadcasted_iota(jnp.int32, (b, v), 1)
              == tok_scr[...]).astype(jnp.float32)
    x = jnp.dot(onehot, emb_ref[...], preferred_element_type=jnp.float32)   # (B, E)

    h = h_scr[...]
    gx = jnp.dot(x, wih_ref[...], preferred_element_type=jnp.float32) + bih_ref[...]
    gh = jnp.dot(h, whh_ref[...], preferred_element_type=jnp.float32) + bhh_ref[...]
    h_new = _gru_gates(gx, gh, h, e)
    h_scr[...] = h_new

    logits = jnp.dot(h_new, wfc_ref[...], preferred_element_type=jnp.float32)  # (B, V)

    # argmax over the vocab axis (first max index, like torch.argmax)
    mx = jnp.max(logits, axis=-1, keepdims=True)
    idx = lax.broadcasted_iota(jnp.int32, (b, v), 1)
    y = jnp.min(jnp.where(logits == mx, idx, v), axis=-1, keepdims=True)       # (B, 1) i32

    tok_scr[...] = y
    logits_ref[...] = logits[None]
    yhat_ref[...] = y[None]


def greedy_decode(start_tok, h0, emb, wih_t, bih, whh_t, bhh, wfc_t, dec_maxlen):
    b, e = h0.shape
    v = emb.shape[0]
    g3 = wih_t.shape[1]
    return pl.pallas_call(
        _greedy_decode_kernel,
        out_shape=(jax.ShapeDtypeStruct((dec_maxlen, b, v), jnp.float32),
                   jax.ShapeDtypeStruct((dec_maxlen, b, 1), jnp.int32)),
        grid_spec=pltpu.PrefetchScalarGridSpec(
            num_scalar_prefetch=0,
            grid=(dec_maxlen,),
            in_specs=[
                pl.BlockSpec((b, 1), lambda t: (0, 0)),     # start tokens
                pl.BlockSpec((b, e), lambda t: (0, 0)),     # h0
                pl.BlockSpec((v, e), lambda t: (0, 0)),     # embedding table
                pl.BlockSpec((e, g3), lambda t: (0, 0)),    # dec W_ih^T
                pl.BlockSpec((1, g3), lambda t: (0, 0)),    # dec b_ih
                pl.BlockSpec((e, g3), lambda t: (0, 0)),    # dec W_hh^T
                pl.BlockSpec((1, g3), lambda t: (0, 0)),    # dec b_hh
                pl.BlockSpec((e, v), lambda t: (0, 0)),     # fc W^T
            ],
            out_specs=[
                pl.BlockSpec((1, b, v), lambda t: (t, 0, 0)),
                pl.BlockSpec((1, b, 1), lambda t: (t, 0, 0)),
            ],
            scratch_shapes=[
                pltpu.VMEM((b, e), jnp.float32),   # hidden carry
                pltpu.VMEM((b, 1), jnp.int32),     # current token carry
            ],
        ),
        compiler_params=pltpu.CompilerParams(
            dimension_semantics=("arbitrary",)),
    )(start_tok, h0, emb, wih_t, bih, whh_t, bhh, wfc_t)


# ---------------------------------------------------------------------------
# G2PNet forward (eval path: encoder -> greedy decode for dec_maxlen steps).
# ---------------------------------------------------------------------------
def g2p_forward(params, input_ids, seqlens, bos_token_id,
                decoder_inputs=None, dec_maxlen=None):
    """Returns (logits (B, T_dec, V), y_hat (B, T_dec), loss=None)."""
    # TODO(synk): training-time teacher-forcing branch + CrossEntropyLoss not
    # implemented; only the eval/greedy path of G2PNet.forward is covered.
    b, s = input_ids.shape
    emb = params["emb"]
    if dec_maxlen is None:
        dec_maxlen = int(max(seqlens) * 3)

    # ---- encoder ----
    ids_flat = input_ids.reshape(b * s, 1).astype(jnp.int32)
    x_proj = embed_and_project(ids_flat, emb,
                               params["enc_wih_t"], params["enc_bih"])
    x_proj_tm = x_proj.reshape(b, s, -1).transpose(1, 0, 2)               # (S, B, 3E)
    seqlens_arr = jnp.asarray(seqlens, jnp.int32)
    mask_tm = (jnp.arange(s, dtype=jnp.int32)[:, None]
               < seqlens_arr[None, :]).astype(jnp.float32)[..., None]      # (S, B, 1)
    h_last = encoder_last_hidden(x_proj_tm, mask_tm,
                                 params["enc_whh_t"], params["enc_bhh"])   # (B, E)

    # ---- decoder (greedy, autoregressive) ----
    if decoder_inputs is not None:
        start_tok = decoder_inputs[:, :1].astype(jnp.int32)
    else:
        start_tok = jnp.full((b, 1), bos_token_id, jnp.int32)
    logits_tm, yhat_tm = greedy_decode(
        start_tok, h_last, emb,
        params["dec_wih_t"], params["dec_bih"],
        params["dec_whh_t"], params["dec_bhh"],
        params["fc_w_t"], dec_maxlen)

    logits = jnp.transpose(logits_tm, (1, 0, 2))        # (B, T_dec, V)
    y_hat = jnp.transpose(yhat_tm[..., 0], (1, 0))      # (B, T_dec)
    return logits, y_hat, None


if __name__ == "__main__":
    key = jax.random.PRNGKey(0)
    B, S, E, V = 2, 8, 128, 72          # batch, src seq len, emb dim, vocab
    bos_token_id = 1
    seqlens = [8, 5]
    dec_maxlen = int(max(seqlens) * 3)  # 24

    k_ids, k_emb, k_enc, k_dec, k_fc = jax.random.split(key, 5)
    ids = jax.random.randint(k_ids, (B, S), 2, V, dtype=jnp.int32)
    valid = jnp.arange(S)[None, :] < jnp.asarray(seqlens)[:, None]
    input_ids = jnp.where(valid, ids, 0)                # pad token = 0

    def gru_params(k, e):
        k1, k2, k3, k4 = jax.random.split(k, 4)
        bound = 1.0 / math.sqrt(e)
        wih = jax.random.uniform(k1, (3 * e, e), jnp.float32, -bound, bound)
        whh = jax.random.uniform(k2, (3 * e, e), jnp.float32, -bound, bound)
        bih = jax.random.uniform(k3, (3 * e,), jnp.float32, -bound, bound)
        bhh = jax.random.uniform(k4, (3 * e,), jnp.float32, -bound, bound)
        return wih.T, bih[None, :], whh.T, bhh[None, :]

    enc_wih_t, enc_bih, enc_whh_t, enc_bhh = gru_params(k_enc, E)
    dec_wih_t, dec_bih, dec_whh_t, dec_bhh = gru_params(k_dec, E)
    emb_table = jax.random.normal(k_emb, (V, E), jnp.float32)
    fc_bound = 1.0 / math.sqrt(E)
    fc_w = jax.random.uniform(k_fc, (V, E), jnp.float32, -fc_bound, fc_bound)

    params = dict(
        emb=emb_table,
        enc_wih_t=enc_wih_t, enc_bih=enc_bih, enc_whh_t=enc_whh_t, enc_bhh=enc_bhh,
        dec_wih_t=dec_wih_t, dec_bih=dec_bih, dec_whh_t=dec_whh_t, dec_bhh=dec_bhh,
        fc_w_t=fc_w.T,
    )

    logits, y_hat, loss = g2p_forward(params, input_ids, seqlens, bos_token_id)
    jax.block_until_ready((logits, y_hat))
    assert logits.shape == (B, dec_maxlen, V)
    assert y_hat.shape == (B, dec_maxlen)
    assert loss is None
    print("KERNEL_OK")
</pallas_src>

<mosaic_0001>
module attributes {stable_mosaic.version = 11 : i64} {
  func.func @_embed_inproj_kernel(%arg0: memref<16x1xi32, #tpu.memory_space<vmem>>, %arg1: memref<72x128xf32, #tpu.memory_space<vmem>>, %arg2: memref<128x384xf32, #tpu.memory_space<vmem>>, %arg3: memref<1x384xf32, #tpu.memory_space<vmem>>, %arg4: memref<16x384xf32, #tpu.memory_space<vmem>>) attributes {dimension_semantics = [], scalar_prefetch = 0 : i64, scratch_operands = 0 : i64, tpu.core_type = #tpu.core_type<tc>} {
    %0 = tpu.iota {dimensions = array<i32: 1>} : vector<16x72xi32>
    %c0 = arith.constant 0 : index
    %c0_0 = arith.constant 0 : index
    %1 = vector.load %arg0[%c0, %c0_0] : memref<16x1xi32, #tpu.memory_space<vmem>>, vector<16x1xi32>
    %2 = vector.broadcast %1 : vector<16x1xi32> to vector<16x72xi32>
    %3 = arith.cmpi eq, %0, %2 : vector<16x72xi32>
    %4 = arith.extui %3 : vector<16x72xi1> to vector<16x72xi32>
    %5 = arith.sitofp %4 : vector<16x72xi32> to vector<16x72xf32>
    %c0_1 = arith.constant 0 : index
    %c0_2 = arith.constant 0 : index
    %6 = vector.load %arg1[%c0_1, %c0_2] : memref<72x128xf32, #tpu.memory_space<vmem>>, vector<72x128xf32>
    %cst = arith.constant dense<0.000000e+00> : vector<16x128xf32>
    %7 = tpu.matmul %5, %6, %cst {dimension_numbers = #tpu.dot_dimension_numbers<[1], [0], [0], [1], [0, 0, 1, 1], [], []>} : vector<16x72xf32>, vector<72x128xf32>, vector<16x128xf32> -> vector<16x128xf32>
    %c0_3 = arith.constant 0 : index
    %c0_4 = arith.constant 0 : index
    %8 = vector.load %arg2[%c0_3, %c0_4] : memref<128x384xf32, #tpu.memory_space<vmem>>, vector<128x384xf32>
    %cst_5 = arith.constant dense<0.000000e+00> : vector<16x384xf32>
    %9 = tpu.matmul %7, %8, %cst_5 {dimension_numbers = #tpu.dot_dimension_numbers<[1], [0], [0], [1], [0, 0, 1, 1], [], []>} : vector<16x128xf32>, vector<128x384xf32>, vector<16x384xf32> -> vector<16x384xf32>
    %c0_6 = arith.constant 0 : index
    %c0_7 = arith.constant 0 : index
    %10 = vector.load %arg3[%c0_6, %c0_7] : memref<1x384xf32, #tpu.memory_space<vmem>>, vector<1x384xf32>
    %11 = vector.broadcast %10 : vector<1x384xf32> to vector<16x384xf32>
    %12 = arith.addf %9, %11 : vector<16x384xf32>
    %c0_8 = arith.constant 0 : index
    %c0_9 = arith.constant 0 : index
    %13 = vector.load %arg4[%c0_8, %c0_9] : memref<16x384xf32, #tpu.memory_space<vmem>>, vector<16x384xf32>
    tpu.vector_store %arg4[%c0_8, %c0_9], %12 {strides = array<i32>} : memref<16x384xf32, #tpu.memory_space<vmem>>, vector<16x384xf32>,
    return
  }
}

</mosaic_0001>

<llo_original>
// kernel: tpu_custom_call.1
$region0: #{tpu_custom_call.1}
  #allocation0 [shape = 'u32[]', space=smem, size = 0x4, offset = 0x4, fixed_abs, tag = 'smem constant byte address 0x4 - core index']
  #allocation1 [shape = 'u32[144,128]{1,0:T(1,128)}', space=vmem, size = 0x12000, scoped, tag = 'internal scratch']
  %s0 = inlined_call_operand.vmem [shape: s32[16,1], index: 0, kind: input, shape index: {}]
  %s1 = inlined_call_operand.hbm [shape: f32[72,128], index: 1, kind: input, shape index: {}]
  %s2 = inlined_call_operand.hbm [shape: f32[128,384], index: 2, kind: input, shape index: {}]
  %s3 = inlined_call_operand.vmem [shape: f32[1,384], index: 3, kind: input, shape index: {}]
  %s4 = inlined_call_operand.hbm [shape: f32[16,384], index: 4, kind: output, shape index: {}]
  %s5 = sld [smem:[#allocation0]]
  $region34: #{tpu_custom_call.1} parent=0
    _
  %s7 = ssub.s32 1, %s5
  %s8 = scalar_select 0, %s7, %s5
  $region1: #{tpu_custom_call.1} parent=0
    #allocation2 [shape = 'u8[36864]{0}', space=vmem, size = 0x9000, scoped, tag = 'input window, operand 1, single buffered']
    #allocation3 [shape = 's32[1]{0}', space=sflag, size = 0x4, scoped, tag = 'scoped memory for tpu_custom_call.1']
    #allocation4 [shape = 's32[1]{0}', space=sflag, size = 0x4, scoped, tag = 'scoped memory for tpu_custom_call.1']
    #allocation5 [shape = 'u8[196608]{0}', space=vmem, size = 0x30000, scoped, tag = 'input window, operand 2, single buffered']
    #allocation6 [shape = 's32[1]{0}', space=sflag, size = 0x4, scoped, tag = 'scoped memory for tpu_custom_call.1']
    #allocation7 [shape = 'u8[24576]{0}', space=vmem, size = 0x6000, scoped, tag = 'output window, operand 0, single buffered']
    %9 = vsyncpa [#allocation3], 0
    %10 = vsyncpa [#allocation6], 0
    %11 = vsyncpa [#allocation4], 0
    // Predicated region
    $region2: #{tpu_custom_call.1} parent=1 // pred_check
      _
    $region3: #{tpu_custom_call.1} parent=1 // pred_check_branch
      %13 = sbr.rel (0) target = $region5
    $region4: #{tpu_custom_call.1} parent=1 // pred_region
      _
    $region5: #{tpu_custom_call.1} parent=1 // pred_fallthru
      _
    // Predicated region
    $region6: #{tpu_custom_call.1} parent=1 // pred_check
      _
    $region7: #{tpu_custom_call.1} parent=1 // pred_check_branch
      %15 = sbr.rel (0) target = $region9
    $region8: #{tpu_custom_call.1} parent=1 // pred_region
      %s17 = ssub.s32 1152, 1152
      %18 = vsyncadd [#allocation3], %s17
      %s19 = sshll.u32 [#allocation2], 4
      %s20 = int_to_ptr.vmem [resolvable:$true] %s19
      %25 = dma.hbm_to_vmem [thread:$0]  %s1, 1152, %s20, [#allocation3], 128, 128, 8
    $region9: #{tpu_custom_call.1} parent=1 // pred_fallthru
      _
    // Predicated region
    $region10: #{tpu_custom_call.1} parent=1 // pred_check
      _
    $region11: #{tpu_custom_call.1} parent=1 // pred_check_branch
      %27 = sbr.rel (0) target = $region13
    $region12: #{tpu_custom_call.1} parent=1 // pred_region
      %s29 = ssub.s32 6144, 6144
      %30 = vsyncadd [#allocation6], %s29
      %s31 = sshll.u32 [#allocation5], 4
      %s32 = int_to_ptr.vmem [resolvable:$true] %s31
      %37 = dma.hbm_to_vmem [thread:$0]  %s2, 6144, %s32, [#allocation6], 384, 384, 24
    $region13: #{tpu_custom_call.1} parent=1 // pred_fallthru
      _
    // Predicated region
    $region14: #{tpu_custom_call.1} parent=1 // pred_check
      _
    $region15: #{tpu_custom_call.1} parent=1 // pred_check_branch
      %39 = sbr.rel (0) target = $region17
    $region16: #{tpu_custom_call.1} parent=1 // pred_region
      _
    $region17: #{tpu_custom_call.1} parent=1 // pred_fallthru
      _
    // Predicated region
    $region18: #{tpu_custom_call.1} parent=1 // pred_check
      _
    $region19: #{tpu_custom_call.1} parent=1 // pred_check_branch
      %41 = sbr.rel (0) target = $region21
    $region20: #{tpu_custom_call.1} parent=1 // pred_region
      %42 = dma.done [#allocation3], 1152
    $region21: #{tpu_custom_call.1} parent=1 // pred_fallthru
      _
    // Predicated region
    $region22: #{tpu_custom_call.1} parent=1 // pred_check
      _
    $region23: #{tpu_custom_call.1} parent=1 // pred_check_branch
      %44 = sbr.rel (0) target = $region25
    $region24: #{tpu_custom_call.1} parent=1 // pred_region
      %45 = dma.done [#allocation6], 6144
    $region25: #{tpu_custom_call.1} parent=1 // pred_fallthru
      _
    %v46 = vlaneseq
    %v47 = vand.u32 %v46, 127
    %v48 = vld [vmem:[%s0] sm:$0xff]
    %v49 = vld [vmem:[%s0 + $0x8] sm:$0xff]
    %50 = vset.pattern.permute.xlu0 0
    %51 = vperm.xlu0 %50, %v48
    %v52 = vpop.permute.xlu0 %51
    %53 = vset.pattern.permute.xlu0 0
    %54 = vperm.xlu0 %53, %v49
    %v55 = vpop.permute.xlu0 %54
    %vm56 = vcmp.eq.s32.totalorder %v47, %v52
    %vm57 = vcmp.eq.s32.totalorder %v47, %v55
    %v58 = vsel %vm56, 1, 0
    %v59 = vsel %vm57, 1, 0
    %v60 = vcvt.s32.f32 %v58
    %v61 = vcvt.s32.f32 %v59
    %v62 = vld [vmem:[#allocation2] sm:$0xff]
    %v63 = vld [vmem:[#allocation2 + $0x8] sm:$0xff]
    %v64 = vld [vmem:[#allocation2 + $0x10] sm:$0xff]
    %v65 = vld [vmem:[#allocation2 + $0x18] sm:$0xff]
    %v66 = vld [vmem:[#allocation2 + $0x20] sm:$0xff]
    %v67 = vld [vmem:[#allocation2 + $0x28] sm:$0xff]
    %v68 = vld [vmem:[#allocation2 + $0x30] sm:$0xff]
    %v69 = vld [vmem:[#allocation2 + $0x38] sm:$0xff]
    %v70 = vld [vmem:[#allocation2 + $0x40] sm:$0xff]
    %vm71 = vcmask 588800
    %v73 = vsel %vm71, %v60, 0
    %v76 = vsel %vm71, %v61, 0
    %78 = vmatprep.subr.mxu0 0.0
    %79 = vmatpush1.msra.mxu0 %v62
    %80 = vmatprep.subr.mxu0 0.0
    %81 = vmatpush1.msra.mxu0 %v63
    %82 = vmatprep.subr.mxu0 0.0
    %83 = vmatpush1.msra.mxu0 %v64
    %84 = vmatprep.subr.mxu0 0.0
    %85 = vmatpush1.msra.mxu0 %v65
    %86 = vmatprep.subr.mxu0 0.0
    %87 = vmatpush1.msra.mxu0 %v66
    %88 = vmatprep.subr.mxu0 0.0
    %89 = vmatpush1.msra.mxu0 %v67
    %90 = vmatprep.subr.mxu0 0.0
    %91 = vmatpush1.msra.mxu0 %v68
    %92 = vmatprep.subr.mxu0 0.0
    %93 = vmatpush1.msra.mxu0 %v69
    %94 = vmatprep.subr.mxu0 0.0
    %95 = vmatpush1.msra.mxu0 %v70
    %96 = vmatprep.subr.mxu0 0.0
    %97 = vmatpush1.msra.mxu0 0.0
    %98 = vmatprep.subr.mxu0 0.0
    %99 = vmatpush1.msra.mxu0 0.0
    %100 = vmatprep.subr.mxu0 0.0
    %101 = vmatpush1.msra.mxu0 0.0
    %102 = vmatprep.subr.mxu0 0.0
    %103 = vmatpush1.msra.mxu0 0.0
    %104 = vmatprep.subr.mxu0 0.0
    %105 = vmatpush1.msra.mxu0 0.0
    %106 = vmatprep.subr.mxu0 0.0
    %107 = vmatpush1.msra.mxu0 0.0
    %108 = vmatprep.subr.mxu0 0.0
    %109 = vmatpush1.msra.mxu0 0.0
    %110 = vmatprep.subr.mxu0 0.0
    %111 = vmatpush1.msra.mxu0 0.0
    %112 = vmatprep.subr.mxu0 0.0
    %113 = vmatpush1.msra.mxu0 0.0
    %114 = vmatprep.subr.mxu0 0.0
    %115 = vmatpush1.msra.mxu0 0.0
    %116 = vmatprep.subr.mxu0 0.0
    %117 = vmatpush1.msra.mxu0 0.0
    %118 = vmatprep.subr.mxu0 0.0
    %119 = vmatpush1.msra.mxu0 0.0
    %120 = vmatprep.subr.mxu0 0.0
    %121 = vmatpush1.msra.mxu0 0.0
    %122 = vmatprep.subr.mxu0 0.0
    %123 = vmatpush1.msra.mxu0 0.0
    %124 = vmatprep.subr.mxu0 0.0
    %125 = vmatpush1.msra.mxu0 0.0
    %126 = vmatprep.subr.mxu0 0.0
    %127 = vmatpush1.msra.mxu0 0.0
    %128 = vmatprep.subr.mxu0 0.0
    %129 = vmatpush1.msra.mxu0 0.0
    %130 = vmatprep.subr.mxu0 0.0
    %131 = vmatpush1.msra.mxu0 0.0
    %132 = vmatprep.subr.mxu0 0.0
    %133 = vmatpush1.msra.mxu0 0.0
    %134 = vmatprep.subr.mxu0 0.0
    %135 = vmatpush1.msra.mxu0 0.0
    %136 = vmatprep.subr.mxu0 0.0
    %137 = vmatpush1.msra.mxu0 0.0
    %138 = vmatprep.subr.mxu0 0.0
    %139 = vmatpush1.msra.mxu0 0.0
    %140 = vmatprep.subr.mxu0 0.0
    %141 = vmatpush1.msra.mxu0 0.0
    %142 = vmatprep.mubr.f32.mxu0 0.0
    %143 = vmatmul.mubr.f32.gmra.mrb[0].mxu0 %v73
    %v144 = vpop.f32.mrb[0].mxu0
    %v145 = vadd.f32 0.0, %v144
    %v146 = vpop.f32.mrb[0].mxu0
    %147 = vmatprep.mubr.f32.mxu0 0.0
    %148 = vmatmul.mubr.f32.gmra.mrb[0].mxu0 %v76
    %v149 = vpop.f32.mrb[0].mxu0
    %v150 = vadd.f32 0.0, %v149
    %v151 = vpop.f32.mrb[0].mxu0
    %152 = vdwg.mxu0
    %v153 = vld [vmem:[#allocation5] sm:$0xff]
    %v154 = vld [vmem:[#allocation5 + $0x8] sm:$0xff]
    %v155 = vld [vmem:[#allocation5 + $0x10] sm:$0xff]
    %v156 = vld [vmem:[#allocation5 + $0x18] sm:$0xff]
    %v157 = vld [vmem:[#allocation5 + $0x20] sm:$0xff]
    %v158 = vld [vmem:[#allocation5 + $0x28] sm:$0xff]
    %v159 = vld [vmem:[#allocation5 + $0x30] sm:$0xff]
    %v160 = vld [vmem:[#allocation5 + $0x38] sm:$0xff]
    %v161 = vld [vmem:[#allocation5 + $0x40] sm:$0xff]
    %v162 = vld [vmem:[#allocation5 + $0x48] sm:$0xff]
    %v163 = vld [vmem:[#allocation5 + $0x50] sm:$0xff]
    %v164 = vld [vmem:[#allocation5 + $0x58] sm:$0xff]
    %v165 = vld [vmem:[#allocation5 + $0x60] sm:$0xff]
    %v166 = vld [vmem:[#allocation5 + $0x68] sm:$0xff]
    %v167 = vld [vmem:[#allocation5 + $0x70] sm:$0xff]
    %v168 = vld [vmem:[#allocation5 + $0x78] sm:$0xff]
    %v169 = vld [vmem:[#allocation5 + $0x80] sm:$0xff]
    %v170 = vld [vmem:[#allocation5 + $0x88] sm:$0xff]
    %v171 = vld [vmem:[#allocation5 + $0x90] sm:$0xff]
    %v172 = vld [vmem:[#allocation5 + $0x98] sm:$0xff]
    %v173 = vld [vmem:[#allocation5 + $0xa0] sm:$0xff]
    %v174 = vld [vmem:[#allocation5 + $0xa8] sm:$0xff]
    %v175 = vld [vmem:[#allocation5 + $0xb0] sm:$0xff]
    %v176 = vld [vmem:[#allocation5 + $0xb8] sm:$0xff]
    %v177 = vld [vmem:[#allocation5 + $0xc0] sm:$0xff]
    %v178 = vld [vmem:[#allocation5 + $0xc8] sm:$0xff]
    %v179 = vld [vmem:[#allocation5 + $0xd0] sm:$0xff]
    %v180 = vld [vmem:[#allocation5 + $0xd8] sm:$0xff]
    %v181 = vld [vmem:[#allocation5 + $0xe0] sm:$0xff]
    %v182 = vld [vmem:[#allocation5 + $0xe8] sm:$0xff]
    %v183 = vld [vmem:[#allocation5 + $0xf0] sm:$0xff]
    %v184 = vld [vmem:[#allocation5 + $0xf8] sm:$0xff]
    %v185 = vld [vmem:[#allocation5 + $0x100] sm:$0xff]
    %v186 = vld [vmem:[#allocation5 + $0x108] sm:$0xff]
    %v187 = vld [vmem:[#allocation5 + $0x110] sm:$0xff]
    %v188 = vld [vmem:[#allocation5 + $0x118] sm:$0xff]
    %v189 = vld [vmem:[#allocation5 + $0x120] sm:$0xff]
    %v190 = vld [vmem:[#allocation5 + $0x128] sm:$0xff]
    %v191 = vld [vmem:[#allocation5 + $0x130] sm:$0xff]
    %v192 = vld [vmem:[#allocation5 + $0x138] sm:$0xff]
    %v193 = vld [vmem:[#allocation5 + $0x140] sm:$0xff]
    %v194 = vld [vmem:[#allocation5 + $0x148] sm:$0xff]
    %v195 = vld [vmem:[#allocation5 + $0x150] sm:$0xff]
    %v196 = vld [vmem:[#allocation5 + $0x158] sm:$0xff]
    %v197 = vld [vmem:[#allocation5 + $0x160] sm:$0xff]
    %v198 = vld [vmem:[#allocation5 + $0x168] sm:$0xff]
    %v199 = vld [vmem:[#allocation5 + $0x170] sm:$0xff]
    %v200 = vld [vmem:[#allocation5 + $0x178] sm:$0xff]
    %v201 = vld [vmem:[%s3] sm:$0x7]
    %v203 = vlaneseq
    %v204 = vshrl.u32 %v203, 7
    %v205 = vsub.s32 0, %v204
    %v206 = vrot.slane %v201, %v205
    %v207 = vlaneseq
    %v208 = vshrl.u32 %v207, 7
    %v209 = vsub.s32 1, %v208
    %v210 = vrot.slane %v201, %v209
    %v211 = vlaneseq
    %v212 = vshrl.u32 %v211, 7
    %v213 = vsub.s32 2, %v212
    %v214 = vrot.slane %v201, %v213
    %218 = vmatprep.subr.mxu0 %v154
    %219 = vmatpush1.msra.mxu0 %v153
    %220 = vmatprep.subr.mxu0 %v157
    %221 = vmatpush1.msra.mxu0 %v156
    %222 = vmatprep.subr.mxu0 %v160
    %223 = vmatpush1.msra.mxu0 %v159
    %224 = vmatprep.subr.mxu0 %v163
    %225 = vmatpush1.msra.mxu0 %v162
    %226 = vmatprep.subr.mxu0 %v166
    %227 = vmatpush1.msra.mxu0 %v165
    %228 = vmatprep.subr.mxu0 %v169
    %229 = vmatpush1.msra.mxu0 %v168
    %230 = vmatprep.subr.mxu0 %v172
    %231 = vmatpush1.msra.mxu0 %v171
    %232 = vmatprep.subr.mxu0 %v175
    %233 = vmatpush1.msra.mxu0 %v174
    %234 = vmatprep.subr.mxu0 %v178
    %235 = vmatpush1.msra.mxu0 %v177
    %236 = vmatprep.subr.mxu0 %v181
    %237 = vmatpush1.msra.mxu0 %v180
    %238 = vmatprep.subr.mxu0 %v184
    %239 = vmatpush1.msra.mxu0 %v183
    %240 = vmatprep.subr.mxu0 %v187
    %241 = vmatpush1.msra.mxu0 %v186
    %242 = vmatprep.subr.mxu0 %v190
    %243 = vmatpush1.msra.mxu0 %v189
    %244 = vmatprep.subr.mxu0 %v193
    %245 = vmatpush1.msra.mxu0 %v192
    %246 = vmatprep.subr.mxu0 %v196
    %247 = vmatpush1.msra.mxu0 %v195
    %248 = vmatprep.subr.mxu0 %v199
    %249 = vmatpush1.msra.mxu0 %v198
    %250 = vmatprep.subr.mxu0 0.0
    %251 = vmatpush1.msra.mxu0 0.0
    %252 = vmatprep.subr.mxu0 0.0
    %253 = vmatpush1.msra.mxu0 0.0
    %254 = vmatprep.subr.mxu0 0.0
    %255 = vmatpush1.msra.mxu0 0.0
    %256 = vmatprep.subr.mxu0 0.0
    %257 = vmatpush1.msra.mxu0 0.0
    %258 = vmatprep.subr.mxu0 0.0
    %259 = vmatpush1.msra.mxu0 0.0
    %260 = vmatprep.subr.mxu0 0.0
    %261 = vmatpush1.msra.mxu0 0.0
    %262 = vmatprep.subr.mxu0 0.0
    %263 = vmatpush1.msra.mxu0 0.0
    %264 = vmatprep.subr.mxu0 0.0
    %265 = vmatpush1.msra.mxu0 0.0
    %266 = vmatprep.subr.mxu0 0.0
    %267 = vmatpush1.msra.mxu0 0.0
    %268 = vmatprep.subr.mxu0 0.0
    %269 = vmatpush1.msra.mxu0 0.0
    %270 = vmatprep.subr.mxu0 0.0
    %271 = vmatpush1.msra.mxu0 0.0
    %272 = vmatprep.subr.mxu0 0.0
    %273 = vmatpush1.msra.mxu0 0.0
    %274 = vmatprep.subr.mxu0 0.0
    %275 = vmatpush1.msra.mxu0 0.0
    %276 = vmatprep.subr.mxu0 0.0
    %277 = vmatpush1.msra.mxu0 0.0
    %278 = vmatprep.subr.mxu0 0.0
    %279 = vmatpush1.msra.mxu0 0.0
    %280 = vmatprep.subr.mxu0 0.0
    %281 = vmatpush1.msra.mxu0 0.0
    %282 = vmatprep.mubr.f32.mxu0 0.0
    %283 = vmatmul.mubr.f32.gmra.mrb[0].mxu0 %v145
    %v284 = vpop.f32.mrb[0].mxu0
    %v285 = vadd.f32 %v206, %v284
    %v286 = vpop.f32.mrb[0].mxu0
    %v287 = vadd.f32 %v210, %v286
    %288 = vmatprep.mubr.f32.mxu0 0.0
    %289 = vmatmul.mubr.f32.gmra.mrb[0].mxu0 %v150
    %v290 = vpop.f32.mrb[0].mxu0
    %v291 = vadd.f32 %v206, %v290
    %v292 = vpop.f32.mrb[0].mxu0
    %v293 = vadd.f32 %v210, %v292
    %294 = vdwg.mxu0
    %295 = vmatprep.subr.mxu0 0.0
    %296 = vmatpush1.msra.mxu0 %v155
    %297 = vmatprep.subr.mxu0 0.0
    %298 = vmatpush1.msra.mxu0 %v158
    %299 = vmatprep.subr.mxu0 0.0
    %300 = vmatpush1.msra.mxu0 %v161
    %301 = vmatprep.subr.mxu0 0.0
    %302 = vmatpush1.msra.mxu0 %v164
    %303 = vmatprep.subr.mxu0 0.0
    %304 = vmatpush1.msra.mxu0 %v167
    %305 = vmatprep.subr.mxu0 0.0
    %306 = vmatpush1.msra.mxu0 %v170
    %307 = vmatprep.subr.mxu0 0.0
    %308 = vmatpush1.msra.mxu0 %v173
    %309 = vmatprep.subr.mxu0 0.0
    %310 = vmatpush1.msra.mxu0 %v176
    %311 = vmatprep.subr.mxu0 0.0
    %312 = vmatpush1.msra.mxu0 %v179
    %313 = vmatprep.subr.mxu0 0.0
    %314 = vmatpush1.msra.mxu0 %v182
    %315 = vmatprep.subr.mxu0 0.0
    %316 = vmatpush1.msra.mxu0 %v185
    %317 = vmatprep.subr.mxu0 0.0
    %318 = vmatpush1.msra.mxu0 %v188
    %319 = vmatprep.subr.mxu0 0.0
    %320 = vmatpush1.msra.mxu0 %v191
    %321 = vmatprep.subr.mxu0 0.0
    %322 = vmatpush1.msra.mxu0 %v194
    %323 = vmatprep.subr.mxu0 0.0
    %324 = vmatpush1.msra.mxu0 %v197
    %325 = vmatprep.subr.mxu0 0.0
    %326 = vmatpush1.msra.mxu0 %v200
    %327 = vmatprep.subr.mxu0 0.0
    %328 = vmatpush1.msra.mxu0 0.0
    %329 = vmatprep.subr.mxu0 0.0
    %330 = vmatpush1.msra.mxu0 0.0
    %331 = vmatprep.subr.mxu0 0.0
    %332 = vmatpush1.msra.mxu0 0.0
    %333 = vmatprep.subr.mxu0 0.0
    %334 = vmatpush1.msra.mxu0 0.0
    %335 = vmatprep.subr.mxu0 0.0
    %336 = vmatpush1.msra.mxu0 0.0
    %337 = vmatprep.subr.mxu0 0.0
    %338 = vmatpush1.msra.mxu0 0.0
    %339 = vmatprep.subr.mxu0 0.0
    %340 = vmatpush1.msra.mxu0 0.0
    %341 = vmatprep.subr.mxu0 0.0
    %342 = vmatpush1.msra.mxu0 0.0
    %343 = vmatprep.subr.mxu0 0.0
    %344 = vmatpush1.msra.mxu0 0.0
    %345 = vmatprep.subr.mxu0 0.0
    %346 = vmatpush1.msra.mxu0 0.0
    %347 = vmatprep.subr.mxu0 0.0
    %348 = vmatpush1.msra.mxu0 0.0
    %349 = vmatprep.subr.mxu0 0.0
    %350 = vmatpush1.msra.mxu0 0.0
    %351 = vmatprep.subr.mxu0 0.0
    %352 = vmatpush1.msra.mxu0 0.0
    %353 = vmatprep.subr.mxu0 0.0
    %354 = vmatpush1.msra.mxu0 0.0
    %355 = vmatprep.subr.mxu0 0.0
    %356 = vmatpush1.msra.mxu0 0.0
    %357 = vmatprep.subr.mxu0 0.0
    %358 = vmatpush1.msra.mxu0 0.0
    %359 = vmatprep.mubr.f32.mxu0 0.0
    %360 = vmatmul.mubr.f32.gmra.mrb[0].mxu0 %v145
    %v361 = vpop.f32.mrb[0].mxu0
    %v362 = vadd.f32 %v214, %v361
    %v363 = vpop.f32.mrb[0].mxu0
    %364 = vmatprep.mubr.f32.mxu0 0.0
    %365 = vmatmul.mubr.f32.gmra.mrb[0].mxu0 %v150
    %v366 = vpop.f32.mrb[0].mxu0
    %v367 = vadd.f32 %v214, %v366
    %v368 = vpop.f32.mrb[0].mxu0
    %369 = vdwg.mxu0
    %370 = vst [vmem:[#allocation7] sm:$0xff] %v285
    %371 = vst [vmem:[#allocation7 + $0x8] sm:$0xff] %v287
    %372 = vst [vmem:[#allocation7 + $0x10] sm:$0xff] %v362
    %373 = vst [vmem:[#allocation7 + $0x18] sm:$0xff] %v291
    %374 = vst [vmem:[#allocation7 + $0x20] sm:$0xff] %v293
    %375 = vst [vmem:[#allocation7 + $0x28] sm:$0xff] %v367
    // Predicated region
    $region26: #{tpu_custom_call.1} parent=1 // pred_check
      _
    $region27: #{tpu_custom_call.1} parent=1 // pred_check_branch
      %377 = sbr.rel (0) target = $region29
    $region28: #{tpu_custom_call.1} parent=1 // pred_region
      %s379 = ssub.s32 768, 768
      %380 = vsyncadd [#allocation4], %s379
      %s381 = sshll.u32 [#allocation7], 4
      %s382 = int_to_ptr.vmem [resolvable:$true] %s381
      %387 = dma.vmem_to_hbm [thread:$0]  %s382, 768, %s4, [#allocation4], 384, 384, 24
    $region29: #{tpu_custom_call.1} parent=1 // pred_fallthru
      _
    // Predicated region
    $region30: #{tpu_custom_call.1} parent=1 // pred_check
      _
    $region31: #{tpu_custom_call.1} parent=1 // pred_check_branch
      %389 = sbr.rel (0) target = $region33
    $region32: #{tpu_custom_call.1} parent=1 // pred_region
      %390 = dma.done [#allocation4], 768
    $region33: #{tpu_custom_call.1} parent=1 // pred_fallthru
      _
    %391 = vsyncpa [#allocation3], 1
    %392 = vsyncpa [#allocation6], 1
    %393 = vsyncpa [#allocation4], 1

</llo_original>
